<compile_context>
chip_gen: v7x
topology: tpu7x:2x2x1
jax: 0.10.0
libtpu: 0.0.40
codegen_flags: <defaults>
</compile_context>

<pallas_src>
import jax
import jax.numpy as jnp
from jax import lax
from jax.experimental import pallas as pl
from jax.experimental.pallas import tpu as pltpu


def _round_up(n, m):
    return ((n + m - 1) // m) * m


# ----------------------------- fused kernel ----------------------------------

def _fused_kernel(x_ref, w_ref, b_ref, t_ref, lcol_ref, lrow_ref,
                  temp_ref, s_ref, o_ref, tv_acc):
    """K-tiled visual encoder + full CLIP / label-pair loss epilogue."""
    k = pl.program_id(0)
    nk = pl.num_programs(0)
    B = t_ref.shape[0]
    Dp = tv_acc.shape[1]

    @pl.when(k == 0)
    def _init():
        # Rows 0:B hold the text embeddings; rows B:2B are the visual
        # accumulator, initialised with the broadcast projection bias so the
        # bias add is folded into the K reduction for free.
        tv_acc[0:B, :] = t_ref[...]
        tv_acc[B:2 * B, :] = jnp.broadcast_to(b_ref[...], (B, Dp))

    # Visual encoder: bf16 operands, f32 MXU accumulation, streamed over K.
    tv_acc[B:2 * B, :] += jnp.dot(x_ref[...], w_ref[...],
                                  preferred_element_type=jnp.float32)

    @pl.when(k == nk - 1)
    def _epilogue():
        temp = temp_ref[0, 0]

        # One fused Gram matmul over both embedding sets (bf16 operands,
        # f32 accumulation).  logits / logits.T / both similarities are
        # slices of G -> no extra matmuls or transposes.
        tv = tv_acc[...].astype(jnp.bfloat16)                      # [2B, Dp]
        G = lax.dot_general(tv, tv, (((1,), (1,)), ((), ())),
                            preferred_element_type=jnp.float32)    # [2B, 2B]
        txt_sim = G[:B, :B]                      # t @ t.T
        img_sim = G[B:, B:]                      # v @ v.T
        logits = G[:B, B:] / temp                # t @ v.T / temp     [B, B]
        logits_t = G[B:, :B] / temp              # == logits.T (exactly)

        # Row-direction softmax / log-softmax: one exp pass feeds both.
        m_r = jnp.max(logits, axis=-1, keepdims=True)
        e_r = jnp.exp(logits - m_r)
        s_r = jnp.sum(e_r, axis=-1, keepdims=True)
        lsm_row = logits - m_r - jnp.log(s_r)
        p_row = e_r * pl.reciprocal(s_r, approx=True)

        # Column-direction terms as lane (axis=-1) reductions on logits_t.
        m_c = jnp.max(logits_t, axis=-1, keepdims=True)
        e_c = jnp.exp(logits_t - m_c)
        s_c = jnp.sum(e_c, axis=-1, keepdims=True)
        lsm_col_t = logits_t - m_c - jnp.log(s_c)
        p_col_t = e_c * pl.reciprocal(s_c, approx=True)

        # CLIP targets.  S is symmetric, so a scalar shift keeps exp(S - m)
        # symmetric and targets.T is just a column renormalisation -> no
        # [B, B] transpose / extra temp.
        S = (img_sim + txt_sim) * (0.5 * temp)
        m_s = jnp.max(jnp.max(S, axis=-1, keepdims=True), axis=0, keepdims=True)
        e_s = jnp.exp(S - m_s)                                     # symmetric
        row_sum = jnp.sum(e_s, axis=-1, keepdims=True)             # [B, 1]
        col_sum = jnp.sum(e_s, axis=0, keepdims=True)              # [1, B]
        targets = e_s * pl.reciprocal(row_sum, approx=True)
        targets_t = e_s * pl.reciprocal(col_sum, approx=True)      # == targets.T

        texts_loss = jnp.sum(-targets * lsm_row, axis=-1, keepdims=True)
        images_loss = jnp.sum(-targets_t * lsm_col_t, axis=-1, keepdims=True)
        clip_loss = (jnp.sum(texts_loss, keepdims=True)
                     + jnp.sum(images_loss, keepdims=True)) * (0.5 / B)

        # Label-pair losses.  Stabilised softmax ratios equal the reference's
        # exp ratios exactly (the max shift cancels numerator/denominator).
        lcol = lcol_ref[...]                                       # [B, 2]
        lrow = lrow_ref[...]                                       # [2, B]

        def pair_loss(col, row):
            sim = (col == row).astype(jnp.float32)                 # [B, B]
            inv_den = pl.reciprocal(
                jnp.sum(sim, axis=-1, keepdims=True), approx=True)
            lpt = jnp.sum(p_row * sim, axis=-1, keepdims=True)
            lpi = jnp.sum(p_col_t * sim, axis=-1, keepdims=True)
            return jnp.sum(-jnp.log(lpt * inv_den) - jnp.log(lpi * inv_den),
                           keepdims=True)                          # (1, 1)

        cls_loss = pair_loss(lcol[:, 0:1], lrow[0:1, :])
        cat_loss = pair_loss(lcol[:, 1:2], lrow[1:2, :])

        # Uncertainty-weighted combine.  s_hats is zero-padded to a 128-lane
        # row, so the full-row sum equals sum(s_hats).
        s_row = s_ref[...]                                         # [1, 128]
        inv_es = jnp.exp(-s_row)
        total = ((-clip_loss) * inv_es[:, 0:1]
                 + cls_loss * inv_es[:, 1:2]
                 + cat_loss * inv_es[:, 2:3]
                 + jnp.sum(s_row, keepdims=True))                  # (1, 1)
        o_ref[...] = jnp.broadcast_to(total, o_ref.shape)


# ----------------------------- host wrapper ----------------------------------

def amodel_forward(images, texts_embeddings, cls, cat,
                   w_proj, b_proj, temperature, s_hats):
    B = images.shape[0]
    F = w_proj.shape[0]
    D = w_proj.shape[1]

    # Lane-dense embedding dim: zero padding is exact for every dot product.
    Dp = _round_up(max(D, 128), 128)
    pd = Dp - D

    # K tile for the weight-streaming (HBM-bound) encoder.  F is zero-padded
    # to a multiple of the tile (exact) -- never fall back to tk == F.
    if F >= 4096:
        tk = 2048
    elif F >= 2048:
        tk = 1024
    elif F >= 1024:
        tk = 512
    else:
        tk = _round_up(F, 256)
    Fp = _round_up(F, tk)
    nk = Fp // tk
    pf = Fp - F

    x = jnp.pad(images.reshape(B, F), ((0, 0), (0, pf))).astype(jnp.bfloat16)
    w = jnp.pad(w_proj, ((0, pf), (0, pd))).astype(jnp.bfloat16)      # [Fp, Dp]
    b = jnp.pad(b_proj.reshape(1, D), ((0, 0), (0, pd))).astype(jnp.float32)
    t = jnp.pad(texts_embeddings, ((0, 0), (0, pd))).astype(jnp.float32)

    labels_col = jnp.concatenate(
        [cls.reshape(B, 1), cat.reshape(B, 1)], axis=1).astype(jnp.int32)
    labels_row = labels_col.T                                         # [2, B]
    temp = jnp.reshape(temperature, (1, 1)).astype(jnp.float32)       # SMEM
    s_pad = jnp.zeros((1, 128), jnp.float32).at[0, :3].set(
        jnp.reshape(s_hats, (3,)).astype(jnp.float32))                # lane-dense

    # Scoped-VMEM budget: double-buffered x/w tiles + resident blocks +
    # [2B, Dp] accumulator + epilogue temporaries, with 2x headroom.
    vmem_needed = (2 * B * tk * 2 + 2 * tk * Dp * 2
                   + 2 * (B + 1) * Dp * 4
                   + 2 * B * Dp * 4
                   + (2 * B) * (2 * B) * 4
                   + 16 * B * B * 4
                   + (1 << 20))
    vmem_limit = int(min(64 * 1024 * 1024,
                         max(32 * 1024 * 1024, 2 * vmem_needed)))

    cost = pl.CostEstimate(
        flops=int(2 * B * Fp * Dp + 2 * (2 * B) * (2 * B) * Dp),
        transcendentals=int(3 * B * B + 6 * B + 128),
        bytes_accessed=int(B * Fp * 2 + Fp * Dp * 2 + (2 * B + 1) * Dp * 4
                           + 6 * B * 4 + 2 * 128 * 4),
    )

    grid_spec = pltpu.PrefetchScalarGridSpec(
        num_scalar_prefetch=0,
        grid=(nk,),
        in_specs=[
            pl.BlockSpec((B, tk), lambda k: (0, k)),        # x    (bf16)
            pl.BlockSpec((tk, Dp), lambda k: (k, 0)),       # w    (bf16)
            pl.BlockSpec((1, Dp), lambda k: (0, 0)),        # bias (f32)
            pl.BlockSpec((B, Dp), lambda k: (0, 0)),        # text embeddings
            pl.BlockSpec((B, 2), lambda k: (0, 0)),         # labels (columns)
            pl.BlockSpec((2, B), lambda k: (0, 0)),         # labels (rows)
            pl.BlockSpec(memory_space=pltpu.MemorySpace.SMEM),  # temperature
            pl.BlockSpec((1, 128), lambda k: (0, 0)),       # s_hats (padded)
        ],
        out_specs=pl.BlockSpec((1, 128), lambda k: (0, 0)),
        scratch_shapes=[pltpu.VMEM((2 * B, Dp), jnp.float32)],  # [t; v] acc
    )

    out = pl.pallas_call(
        _fused_kernel,
        out_shape=jax.ShapeDtypeStruct((1, 128), jnp.float32),
        grid_spec=grid_spec,
        compiler_params=pltpu.CompilerParams(
            dimension_semantics=("arbitrary",),
            vmem_limit_bytes=vmem_limit),
        cost_estimate=cost,
    )(x, w, b, t, labels_col, labels_row, temp, s_pad)
    return out[0, 0]


# ----------------------------- pure-JAX reference (mirrors the PyTorch) ------

def _reference(x_bf16, w_bf16, b, t, cls, cat, temperature, s_hats):
    # Same math as the PyTorch module; similarity-matmul operands are bf16
    # (f32 accumulation), matching the kernel's MXU precision choice.
    v = jnp.dot(x_bf16, w_bf16, preferred_element_type=jnp.float32) + b
    vb = v.astype(jnp.bfloat16).astype(jnp.float32)
    tb = t.astype(jnp.bfloat16).astype(jnp.float32)
    logits = (tb @ vb.T) / temperature
    targets = jax.nn.softmax((vb @ vb.T + tb @ tb.T) / 2 * temperature, axis=-1)
    texts_loss = jnp.sum(-targets * jax.nn.log_softmax(logits, axis=-1), axis=1)
    images_loss = jnp.sum(-targets.T * jax.nn.log_softmax(logits.T, axis=-1),
                          axis=1)
    clip = jnp.mean((texts_loss + images_loss) / 2)

    def pair(labels):
        lp = jnp.exp(logits)
        sim = (labels == labels.T).astype(jnp.float32)
        l2 = lp * sim
        lpt = l2.sum(1) / lp.sum(1)
        lpi = l2.sum(0) / lp.sum(0)
        den = sim.sum(0)
        return jnp.sum(-jnp.log(lpt / den) - jnp.log(lpi / den))

    loss3 = jnp.stack([-clip, pair(cls), pair(cat)])
    return jnp.sum(loss3 / jnp.exp(s_hats)) + jnp.sum(s_hats)


# ----------------------------- main -------------------------------------------

if __name__ == "__main__":
    key = jax.random.PRNGKey(0)
    kx, kt, kw, kb, kc1, kc2 = jax.random.split(key, 6)

    B, C, H, W, D = 8, 4, 16, 16, 32
    F = C * H * W

    images = jax.random.normal(kx, (B, C, H, W), jnp.float32)
    # Scaled so exp(logits / 0.07) stays well inside f32 range.
    texts_embeddings = jax.random.normal(kt, (B, D), jnp.float32) * 0.1
    cls = jax.random.randint(kc1, (B, 1), 0, 3, jnp.int32)
    cat = jax.random.randint(kc2, (B, 1), 0, 5, jnp.int32)

    w_proj = (jax.random.normal(kw, (F, D), jnp.float32)
              / jnp.sqrt(jnp.float32(F)) * 0.1)
    b_proj = jax.random.normal(kb, (1, D), jnp.float32) * 0.01
    temperature = jnp.float32(0.07)                 # nn.Parameter(tensor(0.07))
    s_hats = jnp.ones((3,), jnp.float32) * 0.5      # nn.Parameter(ones(3)/2)

    total = amodel_forward(images, texts_embeddings, cls, cat,
                           w_proj, b_proj, temperature, s_hats)
    total = jax.block_until_ready(total)

    # Reference consumes the same bf16 MXU operands as the kernel.
    x_flat = images.reshape(B, F).astype(jnp.bfloat16)
    ref = _reference(x_flat, w_proj.astype(jnp.bfloat16), b_proj,
                     texts_embeddings, cls, cat, temperature, s_hats)

    assert jnp.isfinite(total), ("non-finite kernel output", total)
    assert jnp.isfinite(ref), ("non-finite reference", ref)
    assert jnp.allclose(total, ref, rtol=1e-2, atol=1e-2), (total, ref)
    print("KERNEL_OK")
</pallas_src>

<mosaic_0001>
module attributes {stable_mosaic.version = 11 : i64} {
  func.func @_fused_kernel(%arg0: i32, %arg1: memref<8x512xbf16, #tpu.memory_space<vmem>>, %arg2: memref<512x128xbf16, #tpu.memory_space<vmem>>, %arg3: memref<1x128xf32, #tpu.memory_space<vmem>>, %arg4: memref<8x128xf32, #tpu.memory_space<vmem>>, %arg5: memref<8x2xi32, #tpu.memory_space<vmem>>, %arg6: memref<2x8xi32, #tpu.memory_space<vmem>>, %arg7: memref<1x1xf32, #tpu.memory_space<smem>>, %arg8: memref<1x128xf32, #tpu.memory_space<vmem>>, %arg9: memref<1x128xf32, #tpu.memory_space<vmem>>, %arg10: memref<16x128xf32, #tpu.memory_space<vmem>>) attributes {dimension_semantics = [#tpu.dimension_semantics<arbitrary>], iteration_bounds = array<i64: 2>, scalar_prefetch = 0 : i64, scratch_operands = 1 : i64, tpu.core_type = #tpu.core_type<tc>, window_params = [{transform_indices = @transform_0, window_bounds = array<i64: 8, 512>}, {transform_indices = @transform_1, window_bounds = array<i64: 512, 128>}, {pipeline_mode = #tpu.pipeline_mode<synchronous>, transform_indices = @transform_2, window_bounds = array<i64: 1, 128>}, {pipeline_mode = #tpu.pipeline_mode<synchronous>, transform_indices = @transform_3, window_bounds = array<i64: 8, 128>}, {pipeline_mode = #tpu.pipeline_mode<synchronous>, transform_indices = @transform_4, window_bounds = array<i64: 8, 2>}, {pipeline_mode = #tpu.pipeline_mode<synchronous>, transform_indices = @transform_5, window_bounds = array<i64: 2, 8>}, {transform_indices = @transform_6, window_bounds = array<i64: 1, 1>}, {pipeline_mode = #tpu.pipeline_mode<synchronous>, transform_indices = @transform_7, window_bounds = array<i64: 1, 128>}, {pipeline_mode = #tpu.pipeline_mode<synchronous>, transform_indices = @transform_8, window_bounds = array<i64: 1, 128>}]} {
    %c0_i32 = arith.constant 0 : i32
    %0 = arith.cmpi eq, %arg0, %c0_i32 : i32
    %1 = arith.extui %0 : i1 to i32
    %c0_i32_0 = arith.constant 0 : i32
    %2 = arith.cmpi ne, %1, %c0_i32_0 : i32
    scf.if %2 {
      %c0_8 = arith.constant 0 : index
      %c0_9 = arith.constant 0 : index
      %12 = vector.load %arg4[%c0_8, %c0_9] : memref<8x128xf32, #tpu.memory_space<vmem>>, vector<8x128xf32>
      %c0_10 = arith.constant 0 : index
      %c0_11 = arith.constant 0 : index
      %13 = vector.load %arg10[%c0_10, %c0_11] : memref<16x128xf32, #tpu.memory_space<vmem>>, vector<8x128xf32>
      tpu.vector_store %arg10[%c0_10, %c0_11], %12 {strides = array<i32>} : memref<16x128xf32, #tpu.memory_space<vmem>>, vector<8x128xf32>,
      %c0_12 = arith.constant 0 : index
      %c0_13 = arith.constant 0 : index
      %14 = vector.load %arg3[%c0_12, %c0_13] : memref<1x128xf32, #tpu.memory_space<vmem>>, vector<1x128xf32>
      %15 = vector.shape_cast %14 : vector<1x128xf32> to vector<1x128xf32>
      %16 = vector.broadcast %15 : vector<1x128xf32> to vector<8x128xf32>
      %c8_14 = arith.constant 8 : index
      %c0_15 = arith.constant 0 : index
      %17 = vector.load %arg10[%c8_14, %c0_15] : memref<16x128xf32, #tpu.memory_space<vmem>>, vector<8x128xf32>
      tpu.vector_store %arg10[%c8_14, %c0_15], %16 {strides = array<i32>} : memref<16x128xf32, #tpu.memory_space<vmem>>, vector<8x128xf32>,
    } else {
    }
    %c8 = arith.constant 8 : index
    %c0 = arith.constant 0 : index
    %3 = vector.load %arg10[%c8, %c0] : memref<16x128xf32, #tpu.memory_space<vmem>>, vector<8x128xf32>
    %c0_1 = arith.constant 0 : index
    %c0_2 = arith.constant 0 : index
    %4 = vector.load %arg1[%c0_1, %c0_2] : memref<8x512xbf16, #tpu.memory_space<vmem>>, vector<8x512xbf16>
    %c0_3 = arith.constant 0 : index
    %c0_4 = arith.constant 0 : index
    %5 = vector.load %arg2[%c0_3, %c0_4] : memref<512x128xbf16, #tpu.memory_space<vmem>>, vector<512x128xbf16>
    %cst = arith.constant dense<0.000000e+00> : vector<8x128xf32>
    %6 = tpu.matmul %4, %5, %cst {dimension_numbers = #tpu.dot_dimension_numbers<[1], [0], [0], [1], [0, 0, 1, 1], [], []>} : vector<8x512xbf16>, vector<512x128xbf16>, vector<8x128xf32> -> vector<8x128xf32>
    %7 = arith.addf %3, %6 : vector<8x128xf32>
    %c8_5 = arith.constant 8 : index
    %c0_6 = arith.constant 0 : index
    %8 = vector.load %arg10[%c8_5, %c0_6] : memref<16x128xf32, #tpu.memory_space<vmem>>, vector<8x128xf32>
    tpu.vector_store %arg10[%c8_5, %c0_6], %7 {strides = array<i32>} : memref<16x128xf32, #tpu.memory_space<vmem>>, vector<8x128xf32>,
    %c1_i32 = arith.constant 1 : i32
    %9 = arith.cmpi eq, %arg0, %c1_i32 : i32
    %10 = arith.extui %9 : i1 to i32
    %c0_i32_7 = arith.constant 0 : i32
    %11 = arith.cmpi ne, %10, %c0_i32_7 : i32
    scf.if %11 {
      %c0_8 = arith.constant 0 : index
      %c0_9 = arith.constant 0 : index
      %12 = memref.load %arg7[%c0_8, %c0_9] : memref<1x1xf32, #tpu.memory_space<smem>>
      %c0_10 = arith.constant 0 : index
      %c0_11 = arith.constant 0 : index
      %13 = vector.load %arg10[%c0_10, %c0_11] : memref<16x128xf32, #tpu.memory_space<vmem>>, vector<16x128xf32>
      %14 = arith.truncf %13 : vector<16x128xf32> to vector<16x128xbf16>
      %cst_12 = arith.constant dense<0.000000e+00> : vector<16x16xf32>
      %15 = tpu.matmul %14, %14, %cst_12 {dimension_numbers = #tpu.dot_dimension_numbers<[1], [1], [0], [0], [0, 0, 1, 0], [], []>} : vector<16x128xbf16>, vector<16x128xbf16>, vector<16x16xf32> -> vector<16x16xf32>
      %16 = vector.extract_strided_slice %15 {offsets = [0, 0], sizes = [8, 8], strides = [1, 1]} : vector<16x16xf32> to vector<8x8xf32>
      %17 = vector.extract_strided_slice %15 {offsets = [8, 8], sizes = [8, 8], strides = [1, 1]} : vector<16x16xf32> to vector<8x8xf32>
      %18 = vector.extract_strided_slice %15 {offsets = [0, 8], sizes = [8, 8], strides = [1, 1]} : vector<16x16xf32> to vector<8x8xf32>
      %19 = vector.broadcast %12 : f32 to vector<8x8xf32>
      %20 = arith.divf %18, %19 : vector<8x8xf32>
      %21 = vector.extract_strided_slice %15 {offsets = [8, 0], sizes = [8, 8], strides = [1, 1]} : vector<16x16xf32> to vector<8x8xf32>
      %22 = vector.broadcast %12 : f32 to vector<8x8xf32>
      %23 = arith.divf %21, %22 : vector<8x8xf32>
      %cst_13 = arith.constant dense<0xFF800000> : vector<8xf32>
      %24 = vector.multi_reduction <maximumf>, %20, %cst_13 [1] : vector<8x8xf32> to vector<8xf32>
      %25 = vector.shape_cast %24 : vector<8xf32> to vector<8x1xf32>
      %26 = vector.broadcast %25 : vector<8x1xf32> to vector<8x8xf32>
      %27 = arith.subf %20, %26 : vector<8x8xf32>
      %28 = math.exp %27 : vector<8x8xf32>
      %cst_14 = arith.constant dense<0.000000e+00> : vector<8xf32>
      %29 = vector.multi_reduction <add>, %28, %cst_14 [1] : vector<8x8xf32> to vector<8xf32>
      %30 = vector.shape_cast %29 : vector<8xf32> to vector<8x1xf32>
      %31 = vector.broadcast %25 : vector<8x1xf32> to vector<8x8xf32>
      %32 = arith.subf %20, %31 : vector<8x8xf32>
      %33 = math.log %30 : vector<8x1xf32>
      %34 = vector.broadcast %33 : vector<8x1xf32> to vector<8x8xf32>
      %35 = arith.subf %32, %34 : vector<8x8xf32>
      %36 = tpu.reciprocal %30 {approx = true} : vector<8x1xf32> -> vector<8x1xf32>
      %37 = vector.broadcast %36 : vector<8x1xf32> to vector<8x8xf32>
      %38 = arith.mulf %28, %37 : vector<8x8xf32>
      %cst_15 = arith.constant dense<0xFF800000> : vector<8xf32>
      %39 = vector.multi_reduction <maximumf>, %23, %cst_15 [1] : vector<8x8xf32> to vector<8xf32>
      %40 = vector.shape_cast %39 : vector<8xf32> to vector<8x1xf32>
      %41 = vector.broadcast %40 : vector<8x1xf32> to vector<8x8xf32>
      %42 = arith.subf %23, %41 : vector<8x8xf32>
      %43 = math.exp %42 : vector<8x8xf32>
      %cst_16 = arith.constant dense<0.000000e+00> : vector<8xf32>
      %44 = vector.multi_reduction <add>, %43, %cst_16 [1] : vector<8x8xf32> to vector<8xf32>
      %45 = vector.shape_cast %44 : vector<8xf32> to vector<8x1xf32>
      %46 = vector.broadcast %40 : vector<8x1xf32> to vector<8x8xf32>
      %47 = arith.subf %23, %46 : vector<8x8xf32>
      %48 = math.log %45 : vector<8x1xf32>
      %49 = vector.broadcast %48 : vector<8x1xf32> to vector<8x8xf32>
      %50 = arith.subf %47, %49 : vector<8x8xf32>
      %51 = tpu.reciprocal %45 {approx = true} : vector<8x1xf32> -> vector<8x1xf32>
      %52 = vector.broadcast %51 : vector<8x1xf32> to vector<8x8xf32>
      %53 = arith.mulf %43, %52 : vector<8x8xf32>
      %54 = arith.addf %17, %16 : vector<8x8xf32>
      %cst_17 = arith.constant 5.000000e-01 : f32
      %55 = arith.mulf %cst_17, %12 : f32
      %56 = vector.broadcast %55 : f32 to vector<8x8xf32>
      %57 = arith.mulf %54, %56 : vector<8x8xf32>
      %cst_18 = arith.constant dense<0xFF800000> : vector<8xf32>
      %58 = vector.multi_reduction <maximumf>, %57, %cst_18 [1] : vector<8x8xf32> to vector<8xf32>
      %59 = vector.shape_cast %58 : vector<8xf32> to vector<8x1xf32>
      %cst_19 = arith.constant dense<0xFF800000> : vector<1xf32>
      %60 = vector.multi_reduction <maximumf>, %59, %cst_19 [0] : vector<8x1xf32> to vector<1xf32>
      %61 = vector.shape_cast %60 : vector<1xf32> to vector<1x1xf32>
      %62 = vector.broadcast %61 : vector<1x1xf32> to vector<8x8xf32>
      %63 = arith.subf %57, %62 : vector<8x8xf32>
      %64 = math.exp %63 : vector<8x8xf32>
      %cst_20 = arith.constant dense<0.000000e+00> : vector<8xf32>
      %65 = vector.multi_reduction <add>, %64, %cst_20 [1] : vector<8x8xf32> to vector<8xf32>
      %66 = vector.shape_cast %65 : vector<8xf32> to vector<8x1xf32>
      %cst_21 = arith.constant dense<0.000000e+00> : vector<8xf32>
      %67 = vector.multi_reduction <add>, %64, %cst_21 [0] : vector<8x8xf32> to vector<8xf32>
      %68 = vector.shape_cast %67 : vector<8xf32> to vector<1x8xf32>
      %69 = tpu.reciprocal %66 {approx = true} : vector<8x1xf32> -> vector<8x1xf32>
      %70 = vector.broadcast %69 : vector<8x1xf32> to vector<8x8xf32>
      %71 = arith.mulf %64, %70 : vector<8x8xf32>
      %72 = tpu.reciprocal %68 {approx = true} : vector<1x8xf32> -> vector<1x8xf32>
      %73 = vector.broadcast %72 : vector<1x8xf32> to vector<8x8xf32>
      %74 = arith.mulf %64, %73 : vector<8x8xf32>
      %cst_22 = arith.constant 0.000000e+00 : f32
      %75 = vector.broadcast %cst_22 : f32 to vector<8x8xf32>
      %76 = arith.subf %75, %71 : vector<8x8xf32>
      %77 = arith.mulf %76, %35 : vector<8x8xf32>
      %cst_23 = arith.constant dense<0.000000e+00> : vector<8xf32>
      %78 = vector.multi_reduction <add>, %77, %cst_23 [1] : vector<8x8xf32> to vector<8xf32>
      %79 = vector.shape_cast %78 : vector<8xf32> to vector<8x1xf32>
      %cst_24 = arith.constant 0.000000e+00 : f32
      %80 = vector.broadcast %cst_24 : f32 to vector<8x8xf32>
      %81 = arith.subf %80, %74 : vector<8x8xf32>
      %82 = arith.mulf %81, %50 : vector<8x8xf32>
      %cst_25 = arith.constant dense<0.000000e+00> : vector<8xf32>
      %83 = vector.multi_reduction <add>, %82, %cst_25 [1] : vector<8x8xf32> to vector<8xf32>
      %84 = vector.shape_cast %83 : vector<8xf32> to vector<8x1xf32>
      %85 = vector.shape_cast %79 : vector<8x1xf32> to vector<1x8x1xf32>
      %cst_26 = arith.constant dense<0.000000e+00> : vector<1xf32>
      %86 = vector.multi_reduction <add>, %85, %cst_26 [1, 2] : vector<1x8x1xf32> to vector<1xf32>
      %87 = vector.shape_cast %86 : vector<1xf32> to vector<1x1x1xf32>
      %88 = vector.extract %87[0, 0, 0] : f32 from vector<1x1x1xf32>
      %89 = vector.broadcast %88 : f32 to vector<1x1xf32>
      %90 = vector.shape_cast %84 : vector<8x1xf32> to vector<1x8x1xf32>
      %cst_27 = arith.constant dense<0.000000e+00> : vector<1xf32>
      %91 = vector.multi_reduction <add>, %90, %cst_27 [1, 2] : vector<1x8x1xf32> to vector<1xf32>
      %92 = vector.shape_cast %91 : vector<1xf32> to vector<1x1x1xf32>
      %93 = vector.extract %92[0, 0, 0] : f32 from vector<1x1x1xf32>
      %94 = vector.broadcast %93 : f32 to vector<1x1xf32>
      %95 = arith.addf %89, %94 : vector<1x1xf32>
      %cst_28 = arith.constant 6.250000e-02 : f32
      %96 = vector.broadcast %cst_28 : f32 to vector<1x1xf32>
      %97 = arith.mulf %95, %96 : vector<1x1xf32>
      %c0_29 = arith.constant 0 : index
      %c0_30 = arith.constant 0 : index
      %98 = vector.load %arg5[%c0_29, %c0_30] : memref<8x2xi32, #tpu.memory_space<vmem>>, vector<8x2xi32>
      %c0_31 = arith.constant 0 : index
      %c0_32 = arith.constant 0 : index
      %99 = vector.load %arg6[%c0_31, %c0_32] : memref<2x8xi32, #tpu.memory_space<vmem>>, vector<2x8xi32>
      %100 = vector.extract_strided_slice %98 {offsets = [0, 0], sizes = [8, 1], strides = [1, 1]} : vector<8x2xi32> to vector<8x1xi32>
      %101 = vector.extract_strided_slice %99 {offsets = [0, 0], sizes = [1, 8], strides = [1, 1]} : vector<2x8xi32> to vector<1x8xi32>
      %102 = vector.broadcast %100 : vector<8x1xi32> to vector<8x8xi32>
      %103 = vector.broadcast %101 : vector<1x8xi32> to vector<8x8xi32>
      %104 = arith.cmpi eq, %102, %103 : vector<8x8xi32>
      %105 = arith.extui %104 : vector<8x8xi1> to vector<8x8xi32>
      %106 = arith.sitofp %105 : vector<8x8xi32> to vector<8x8xf32>
      %cst_33 = arith.constant dense<0.000000e+00> : vector<8xf32>
      %107 = vector.multi_reduction <add>, %106, %cst_33 [1] : vector<8x8xf32> to vector<8xf32>
      %108 = vector.shape_cast %107 : vector<8xf32> to vector<8x1xf32>
      %109 = tpu.reciprocal %108 {approx = true} : vector<8x1xf32> -> vector<8x1xf32>
      %110 = arith.mulf %38, %106 : vector<8x8xf32>
      %cst_34 = arith.constant dense<0.000000e+00> : vector<8xf32>
      %111 = vector.multi_reduction <add>, %110, %cst_34 [1] : vector<8x8xf32> to vector<8xf32>
      %112 = vector.shape_cast %111 : vector<8xf32> to vector<8x1xf32>
      %113 = arith.mulf %53, %106 : vector<8x8xf32>
      %cst_35 = arith.constant dense<0.000000e+00> : vector<8xf32>
      %114 = vector.multi_reduction <add>, %113, %cst_35 [1] : vector<8x8xf32> to vector<8xf32>
      %115 = vector.shape_cast %114 : vector<8xf32> to vector<8x1xf32>
      %116 = arith.mulf %112, %109 : vector<8x1xf32>
      %117 = math.log %116 : vector<8x1xf32>
      %cst_36 = arith.constant 0.000000e+00 : f32
      %118 = vector.broadcast %cst_36 : f32 to vector<8x1xf32>
      %119 = arith.subf %118, %117 : vector<8x1xf32>
      %120 = arith.mulf %115, %109 : vector<8x1xf32>
      %121 = math.log %120 : vector<8x1xf32>
      %122 = arith.subf %119, %121 : vector<8x1xf32>
      %123 = vector.shape_cast %122 : vector<8x1xf32> to vector<1x8x1xf32>
      %cst_37 = arith.constant dense<0.000000e+00> : vector<1xf32>
      %124 = vector.multi_reduction <add>, %123, %cst_37 [1, 2] : vector<1x8x1xf32> to vector<1xf32>
      %125 = vector.shape_cast %124 : vector<1xf32> to vector<1x1x1xf32>
      %126 = vector.extract %125[0, 0, 0] : f32 from vector<1x1x1xf32>
      %127 = vector.broadcast %126 : f32 to vector<1x1xf32>
      %128 = vector.extract_strided_slice %98 {offsets = [0, 1], sizes = [8, 1], strides = [1, 1]} : vector<8x2xi32> to vector<8x1xi32>
      %129 = vector.extract_strided_slice %99 {offsets = [1, 0], sizes = [1, 8], strides = [1, 1]} : vector<2x8xi32> to vector<1x8xi32>
      %130 = vector.broadcast %128 : vector<8x1xi32> to vector<8x8xi32>
      %131 = vector.broadcast %129 : vector<1x8xi32> to vector<8x8xi32>
      %132 = arith.cmpi eq, %130, %131 : vector<8x8xi32>
      %133 = arith.extui %132 : vector<8x8xi1> to vector<8x8xi32>
      %134 = arith.sitofp %133 : vector<8x8xi32> to vector<8x8xf32>
      %cst_38 = arith.constant dense<0.000000e+00> : vector<8xf32>
      %135 = vector.multi_reduction <add>, %134, %cst_38 [1] : vector<8x8xf32> to vector<8xf32>
      %136 = vector.shape_cast %135 : vector<8xf32> to vector<8x1xf32>
      %137 = tpu.reciprocal %136 {approx = true} : vector<8x1xf32> -> vector<8x1xf32>
      %138 = arith.mulf %38, %134 : vector<8x8xf32>
      %cst_39 = arith.constant dense<0.000000e+00> : vector<8xf32>
      %139 = vector.multi_reduction <add>, %138, %cst_39 [1] : vector<8x8xf32> to vector<8xf32>
      %140 = vector.shape_cast %139 : vector<8xf32> to vector<8x1xf32>
      %141 = arith.mulf %53, %134 : vector<8x8xf32>
      %cst_40 = arith.constant dense<0.000000e+00> : vector<8xf32>
      %142 = vector.multi_reduction <add>, %141, %cst_40 [1] : vector<8x8xf32> to vector<8xf32>
      %143 = vector.shape_cast %142 : vector<8xf32> to vector<8x1xf32>
      %144 = arith.mulf %140, %137 : vector<8x1xf32>
      %145 = math.log %144 : vector<8x1xf32>
      %cst_41 = arith.constant 0.000000e+00 : f32
      %146 = vector.broadcast %cst_41 : f32 to vector<8x1xf32>
      %147 = arith.subf %146, %145 : vector<8x1xf32>
      %148 = arith.mulf %143, %137 : vector<8x1xf32>
      %149 = math.log %148 : vector<8x1xf32>
      %150 = arith.subf %147, %149 : vector<8x1xf32>
      %151 = vector.shape_cast %150 : vector<8x1xf32> to vector<1x8x1xf32>
      %cst_42 = arith.constant dense<0.000000e+00> : vector<1xf32>
      %152 = vector.multi_reduction <add>, %151, %cst_42 [1, 2] : vector<1x8x1xf32> to vector<1xf32>
      %153 = vector.shape_cast %152 : vector<1xf32> to vector<1x1x1xf32>
      %154 = vector.extract %153[0, 0, 0] : f32 from vector<1x1x1xf32>
      %155 = vector.broadcast %154 : f32 to vector<1x1xf32>
      %c0_43 = arith.constant 0 : index
      %c0_44 = arith.constant 0 : index
      %156 = vector.load %arg8[%c0_43, %c0_44] : memref<1x128xf32, #tpu.memory_space<vmem>>, vector<1x128xf32>
      %cst_45 = arith.constant 0.000000e+00 : f32
      %157 = vector.broadcast %cst_45 : f32 to vector<1x128xf32>
      %158 = arith.subf %157, %156 : vector<1x128xf32>
      %159 = math.exp %158 : vector<1x128xf32>
      %cst_46 = arith.constant 0.000000e+00 : f32
      %160 = vector.broadcast %cst_46 : f32 to vector<1x1xf32>
      %161 = arith.subf %160, %97 : vector<1x1xf32>
      %162 = vector.extract_strided_slice %159 {offsets = [0, 0], sizes = [1, 1], strides = [1, 1]} : vector<1x128xf32> to vector<1x1xf32>
      %163 = arith.mulf %161, %162 : vector<1x1xf32>
      %164 = vector.extract_strided_slice %159 {offsets = [0, 1], sizes = [1, 1], strides = [1, 1]} : vector<1x128xf32> to vector<1x1xf32>
      %165 = arith.mulf %127, %164 : vector<1x1xf32>
      %166 = arith.addf %163, %165 : vector<1x1xf32>
      %167 = vector.extract_strided_slice %159 {offsets = [0, 2], sizes = [1, 1], strides = [1, 1]} : vector<1x128xf32> to vector<1x1xf32>
      %168 = arith.mulf %155, %167 : vector<1x1xf32>
      %169 = arith.addf %166, %168 : vector<1x1xf32>
      %170 = vector.shape_cast %156 : vector<1x128xf32> to vector<1x1x128xf32>
      %cst_47 = arith.constant dense<0.000000e+00> : vector<1xf32>
      %171 = vector.multi_reduction <add>, %170, %cst_47 [1, 2] : vector<1x1x128xf32> to vector<1xf32>
      %172 = vector.shape_cast %171 : vector<1xf32> to vector<1x1x1xf32>
      %173 = vector.extract %172[0, 0, 0] : f32 from vector<1x1x1xf32>
      %174 = vector.broadcast %173 : f32 to vector<1x1xf32>
      %175 = arith.addf %169, %174 : vector<1x1xf32>
      %176 = vector.shape_cast %175 : vector<1x1xf32> to vector<1x1xf32>
      %177 = vector.broadcast %176 : vector<1x1xf32> to vector<1x128xf32>
      %c0_48 = arith.constant 0 : index
      %c0_49 = arith.constant 0 : index
      %178 = vector.load %arg9[%c0_48, %c0_49] : memref<1x128xf32, #tpu.memory_space<vmem>>, vector<1x128xf32>
      tpu.vector_store %arg9[%c0_48, %c0_49], %177 {strides = array<i32>} : memref<1x128xf32, #tpu.memory_space<vmem>>, vector<1x128xf32>,
    } else {
    }
    return
  }
  func.func @transform_0(%arg0: i32) -> (i32, i32) {
    %c0_i32 = arith.constant 0 : i32
    %c0_i32_0 = arith.constant 0 : i32
    return %c0_i32, %arg0 : i32, i32
  }
  func.func @transform_1(%arg0: i32) -> (i32, i32) {
    %c0_i32 = arith.constant 0 : i32
    %c0_i32_0 = arith.constant 0 : i32
    return %arg0, %c0_i32 : i32, i32
  }
  func.func @transform_2(%arg0: i32) -> (i32, i32) {
    %c0_i32 = arith.constant 0 : i32
    %c0_i32_0 = arith.constant 0 : i32
    %c0_i32_1 = arith.constant 0 : i32
    return %c0_i32, %c0_i32_0 : i32, i32
  }
  func.func @transform_3(%arg0: i32) -> (i32, i32) {
    %c0_i32 = arith.constant 0 : i32
    %c0_i32_0 = arith.constant 0 : i32
    %c0_i32_1 = arith.constant 0 : i32
    return %c0_i32, %c0_i32_0 : i32, i32
  }
  func.func @transform_4(%arg0: i32) -> (i32, i32) {
    %c0_i32 = arith.constant 0 : i32
    %c0_i32_0 = arith.constant 0 : i32
    %c0_i32_1 = arith.constant 0 : i32
    return %c0_i32, %c0_i32_0 : i32, i32
  }
  func.func @transform_5(%arg0: i32) -> (i32, i32) {
    %c0_i32 = arith.constant 0 : i32
    %c0_i32_0 = arith.constant 0 : i32
    %c0_i32_1 = arith.constant 0 : i32
    return %c0_i32, %c0_i32_0 : i32, i32
  }
  func.func @transform_6(%arg0: i32) -> (i32, i32) {
    %c0_i32 = arith.constant 0 : i32
    %c0_i32_0 = arith.constant 0 : i32
    %c0_i32_1 = arith.constant 0 : i32
    return %c0_i32, %c0_i32_0 : i32, i32
  }
  func.func @transform_7(%arg0: i32) -> (i32, i32) {
    %c0_i32 = arith.constant 0 : i32
    %c0_i32_0 = arith.constant 0 : i32
    %c0_i32_1 = arith.constant 0 : i32
    return %c0_i32, %c0_i32_0 : i32, i32
  }
  func.func @transform_8(%arg0: i32) -> (i32, i32) {
    %c0_i32 = arith.constant 0 : i32
    %c0_i32_0 = arith.constant 0 : i32
    %c0_i32_1 = arith.constant 0 : i32
    return %c0_i32, %c0_i32_0 : i32, i32
  }
}

</mosaic_0001>

<llo_original>
// kernel: tpu_custom_call.1
$region0: #{tpu_custom_call.1}
  #allocation0 [shape = 'u32[]', space=smem, size = 0x4, offset = 0x4, fixed_abs, tag = 'smem constant byte address 0x4 - core index']
  #allocation1 [shape = 'u32[144,128]{1,0:T(1,128)}', space=vmem, size = 0x12000, scoped, tag = 'internal scratch']
  #allocation2 [shape = 'f32[16,128]{1,0:T(8,128)}', space=vmem, size = 0x2000, scoped, tag = 'scratch operand']
  #allocation3 [shape = 'f32[1,1]{1,0:T(1,128)S(6)}', space=smem, size = 0x200, scoped, tag = 'scoped memory for tpu_custom_call.1']
  %s0 = inlined_call_operand.hbm [shape: bf16[8,1024], index: 0, kind: input, shape index: {}]
  %s1 = inlined_call_operand.hbm [shape: bf16[1024,128], index: 1, kind: input, shape index: {}]
  %s2 = inlined_call_operand.vmem [shape: f32[1,128], index: 2, kind: input, shape index: {}]
  %s3 = inlined_call_operand.vmem [shape: f32[8,128], index: 3, kind: input, shape index: {}]
  %s4 = inlined_call_operand.vmem [shape: s32[8,2], index: 4, kind: input, shape index: {}]
  %s5 = inlined_call_operand.vmem [shape: s32[2,8], index: 5, kind: input, shape index: {}]
  %s6 = inlined_call_operand.<no memory space> [shape: f32[1,1], index: 6, kind: input, shape index: {}]
  %s7 = inlined_call_operand.vmem [shape: f32[1,128], index: 7, kind: input, shape index: {}]
  %s8 = inlined_call_operand.hbm [shape: f32[1,128], index: 8, kind: output, shape index: {}]
  %s9 = sld [smem:[#allocation0]]
  $region81: #{tpu_custom_call.1} parent=0
    _
  %s11 = ssub.s32 1, %s9
  %s12 = scalar_select 0, %s11, %s9
  %13 = sst [smem:[#allocation3]] %s6
  $region1: #{tpu_custom_call.1} parent=0
    #allocation4 [shape = 'u8[16384]{0}', space=vmem, size = 0x4000, scoped, tag = 'input window, operand 0']
    #allocation5 [shape = 's32[2]{0}', space=sflag, size = 0x8, scoped, tag = 'scoped memory for tpu_custom_call.1']
    #allocation6 [shape = 's32[2]{0}', space=sflag, size = 0x8, scoped, tag = 'scoped memory for tpu_custom_call.1']
    #allocation7 [shape = 'u8[262144]{0}', space=vmem, size = 0x40000, scoped, tag = 'input window, operand 1']
    #allocation8 [shape = 's32[2]{0}', space=sflag, size = 0x8, scoped, tag = 'scoped memory for tpu_custom_call.1']
    #allocation9 [shape = 'u8[512]{0}', space=vmem, size = 0x400, scoped, tag = 'output window, operand 0, single buffered']
    %14 = vsyncpa [#allocation5], 0
    %s15 = scalar_lea.sflag [#allocation5], 1
    %16 = vsyncpa %s15, 0
    %17 = vsyncpa [#allocation8], 0
    %s18 = scalar_lea.sflag [#allocation8], 1
    %19 = vsyncpa %s18, 0
    %20 = vsyncpa [#allocation6], 0
    loop: start=0, step=1, limit=4
    $region2: #{tpu_custom_call.1} parent=1 // loop_pre_header
      _
    $region3: #{tpu_custom_call.1} parent=1 // loop_header
      %s22 = sphi 0, %s26
      %p23 = scmp.ge.s32.totalorder %s22, 4
      %s32 = sphi 0, %s34
      %s35 = sphi 0, %s32
      %s36 = sphi 0, %s35
      %s52 = sphi 0, %s36
      %s58 = sphi 0, %s60
      %s61 = sphi 0, %s58
      %s62 = sphi 0, %s61
      %s78 = sphi 0, %s62
      %s82 = sphi 0, %s82
      %s84 = sphi 0, %s82
      %s85 = sphi 0, %s84
      %s99 = sphi 0, %s85
      %s103 = sphi 0, %s103
      %s105 = sphi 0, %s103
      %s106 = sphi 0, %s105
      %s120 = sphi 0, %s106
      %s124 = sphi 0, %s124
      %s126 = sphi 0, %s124
      %s127 = sphi 0, %s126
      %s141 = sphi 0, %s127
      %s145 = sphi 0, %s145
      %s147 = sphi 0, %s145
      %s148 = sphi 0, %s147
      %s162 = sphi 0, %s148
      %s166 = sphi 0, %s166
      %s168 = sphi 0, %s166
      %s169 = sphi 0, %s168
      %s183 = sphi 0, %s169
      %s187 = sphi 0, %s187
      %s189 = sphi 0, %s187
      %s190 = sphi 0, %s189
      %s204 = sphi 0, %s190
      %s208 = sphi 0, %s208
      %s210 = sphi 0, %s208
      %s211 = sphi 0, %s210
      %s225 = sphi 0, %s211
    $region4: #{tpu_custom_call.1} parent=1 // loop_header_branch
      %25 = sbr.rel (%p23) target = $region8
    $region5: #{tpu_custom_call.1} parent=1 // loop_body
      %s27 = ssub.s32 %s22, 1
      %s28 = ssub.s32 %s22, 2
      %s29 = sadd.s32 %s22, 1
      %s30 = ssub.s32 %s22, %s29
      %p31 = scmp.eq.s32.totalorder %s30, 0
      %s33 = sadd.s32 %s32, 1
      %s34 = scalar_select %p31, %s32, %s33
      %p37 = pneg %p31
      %p38 = scmp.eq.s32.totalorder %s22, 1
      %p39 = por %p37, %p38
      %p40 = scmp.ne.s32.totalorder %s32, %s35
      %p41 = scmp.eq.s32.totalorder %s22, 0
      %p42 = por %p40, %p41
      %p43 = scmp.ne.s32.totalorder %s32, %s35
      %p44 = scmp.eq.s32.totalorder %s27, 1
      %p45 = por %p43, %p44
      %p46 = scmp.ne.s32.totalorder %s35, %s36
      %p47 = scmp.eq.s32.totalorder %s27, 0
      %p48 = por %p46, %p47
      %p49 = scmp.ne.s32.totalorder %s35, %s36
      %p50 = scmp.eq.s32.totalorder %s28, 1
      %p51 = por %p49, %p50
      %p53 = scmp.ne.s32.totalorder %s36, %s52
      %p54 = scmp.eq.s32.totalorder %s28, 0
      %p55 = por %p53, %p54
      %s56 = ssub.s32 %s22, %s29
      %p57 = scmp.eq.s32.totalorder %s56, 0
      %s59 = sadd.s32 %s58, 1
      %s60 = scalar_select %p57, %s58, %s59
      %p63 = pneg %p57
      %p64 = scmp.eq.s32.totalorder %s22, 1
      %p65 = por %p63, %p64
      %p66 = scmp.ne.s32.totalorder %s58, %s61
      %p67 = scmp.eq.s32.totalorder %s22, 0
      %p68 = por %p66, %p67
      %p69 = scmp.ne.s32.totalorder %s58, %s61
      %p70 = scmp.eq.s32.totalorder %s27, 1
      %p71 = por %p69, %p70
      %p72 = scmp.ne.s32.totalorder %s61, %s62
      %p73 = scmp.eq.s32.totalorder %s27, 0
      %p74 = por %p72, %p73
      %p75 = scmp.ne.s32.totalorder %s61, %s62
      %p76 = scmp.eq.s32.totalorder %s28, 1
      %p77 = por %p75, %p76
      %p79 = scmp.ne.s32.totalorder %s62, %s78
      %p80 = scmp.eq.s32.totalorder %s28, 0
      %p81 = por %p79, %p80
      %s83 = sadd.s32 %s82, 1
      %p86 = scmp.eq.s32.totalorder %s22, 1
      %p87 = scmp.ne.s32.totalorder %s82, %s84
      %p88 = scmp.eq.s32.totalorder %s22, 0
      %p89 = por %p87, %p88
      %p90 = scmp.ne.s32.totalorder %s82, %s84
      %p91 = scmp.eq.s32.totalorder %s27, 1
      %p92 = por %p90, %p91
      %p93 = scmp.ne.s32.totalorder %s84, %s85
      %p94 = scmp.eq.s32.totalorder %s27, 0
      %p95 = por %p93, %p94
      %p96 = scmp.ne.s32.totalorder %s84, %s85
      %p97 = scmp.eq.s32.totalorder %s28, 1
      %p98 = por %p96, %p97
      %p100 = scmp.ne.s32.totalorder %s85, %s99
      %p101 = scmp.eq.s32.totalorder %s28, 0
      %p102 = por %p100, %p101
      %s104 = sadd.s32 %s103, 1
      %p107 = scmp.eq.s32.totalorder %s22, 1
      %p108 = scmp.ne.s32.totalorder %s103, %s105
      %p109 = scmp.eq.s32.totalorder %s22, 0
      %p110 = por %p108, %p109
      %p111 = scmp.ne.s32.totalorder %s103, %s105
      %p112 = scmp.eq.s32.totalorder %s27, 1
      %p113 = por %p111, %p112
      %p114 = scmp.ne.s32.totalorder %s105, %s106
      %p115 = scmp.eq.s32.totalorder %s27, 0
      %p116 = por %p114, %p115
      %p117 = scmp.ne.s32.totalorder %s105, %s106
      %p118 = scmp.eq.s32.totalorder %s28, 1
      %p119 = por %p117, %p118
      %p121 = scmp.ne.s32.totalorder %s106, %s120
      %p122 = scmp.eq.s32.totalorder %s28, 0
      %p123 = por %p121, %p122
      %s125 = sadd.s32 %s124, 1
      %p128 = scmp.eq.s32.totalorder %s22, 1
      %p129 = scmp.ne.s32.totalorder %s124, %s126
      %p130 = scmp.eq.s32.totalorder %s22, 0
      %p131 = por %p129, %p130
      %p132 = scmp.ne.s32.totalorder %s124, %s126
      %p133 = scmp.eq.s32.totalorder %s27, 1
      %p134 = por %p132, %p133
      %p135 = scmp.ne.s32.totalorder %s126, %s127
      %p136 = scmp.eq.s32.totalorder %s27, 0
      %p137 = por %p135, %p136
      %p138 = scmp.ne.s32.totalorder %s126, %s127
      %p139 = scmp.eq.s32.totalorder %s28, 1
      %p140 = por %p138, %p139
      %p142 = scmp.ne.s32.totalorder %s127, %s141
      %p143 = scmp.eq.s32.totalorder %s28, 0
      %p144 = por %p142, %p143
      %s146 = sadd.s32 %s145, 1
      %p149 = scmp.eq.s32.totalorder %s22, 1
      %p150 = scmp.ne.s32.totalorder %s145, %s147
      %p151 = scmp.eq.s32.totalorder %s22, 0
      %p152 = por %p150, %p151
      %p153 = scmp.ne.s32.totalorder %s145, %s147
      %p154 = scmp.eq.s32.totalorder %s27, 1
      %p155 = por %p153, %p154
      %p156 = scmp.ne.s32.totalorder %s147, %s148
      %p157 = scmp.eq.s32.totalorder %s27, 0
      %p158 = por %p156, %p157
      %p159 = scmp.ne.s32.totalorder %s147, %s148
      %p160 = scmp.eq.s32.totalorder %s28, 1
      %p161 = por %p159, %p160
      %p163 = scmp.ne.s32.totalorder %s148, %s162
      %p164 = scmp.eq.s32.totalorder %s28, 0
      %p165 = por %p163, %p164
      %s167 = sadd.s32 %s166, 1
      %p170 = scmp.eq.s32.totalorder %s22, 1
      %p171 = scmp.ne.s32.totalorder %s166, %s168
      %p172 = scmp.eq.s32.totalorder %s22, 0
      %p173 = por %p171, %p172
      %p174 = scmp.ne.s32.totalorder %s166, %s168
      %p175 = scmp.eq.s32.totalorder %s27, 1
      %p176 = por %p174, %p175
      %p177 = scmp.ne.s32.totalorder %s168, %s169
      %p178 = scmp.eq.s32.totalorder %s27, 0
      %p179 = por %p177, %p178
      %p180 = scmp.ne.s32.totalorder %s168, %s169
      %p181 = scmp.eq.s32.totalorder %s28, 1
      %p182 = por %p180, %p181
      %p184 = scmp.ne.s32.totalorder %s169, %s183
      %p185 = scmp.eq.s32.totalorder %s28, 0
      %p186 = por %p184, %p185
      %s188 = sadd.s32 %s187, 1
      %p191 = scmp.eq.s32.totalorder %s22, 1
      %p192 = scmp.ne.s32.totalorder %s187, %s189
      %p193 = scmp.eq.s32.totalorder %s22, 0
      %p194 = por %p192, %p193
      %p195 = scmp.ne.s32.totalorder %s187, %s189
      %p196 = scmp.eq.s32.totalorder %s27, 1
      %p197 = por %p195, %p196
      %p198 = scmp.ne.s32.totalorder %s189, %s190
      %p199 = scmp.eq.s32.totalorder %s27, 0
      %p200 = por %p198, %p199
      %p201 = scmp.ne.s32.totalorder %s189, %s190
      %p202 = scmp.eq.s32.totalorder %s28, 1
      %p203 = por %p201, %p202
      %p205 = scmp.ne.s32.totalorder %s190, %s204
      %p206 = scmp.eq.s32.totalorder %s28, 0
      %p207 = por %p205, %p206
      %s209 = sadd.s32 %s208, 1
      %p212 = scmp.eq.s32.totalorder %s22, 1
      %p213 = scmp.ne.s32.totalorder %s208, %s210
      %p214 = scmp.eq.s32.totalorder %s22, 0
      %p215 = por %p213, %p214
      %p216 = scmp.ne.s32.totalorder %s208, %s210
      %p217 = scmp.eq.s32.totalorder %s27, 1
      %p218 = por %p216, %p217
      %p219 = scmp.ne.s32.totalorder %s210, %s211
      %p220 = scmp.eq.s32.totalorder %s27, 0
      %p221 = por %p219, %p220
      %p222 = scmp.ne.s32.totalorder %s210, %s211
      %p223 = scmp.eq.s32.totalorder %s28, 1
      %p224 = por %p222, %p223
      %p226 = scmp.ne.s32.totalorder %s211, %s225
      %p227 = scmp.eq.s32.totalorder %s28, 0
      %p228 = por %p226, %p227
      %p229 = scmp.le.s32.totalorder 1, %s22
      %p230 = scmp.lt.s32.totalorder %s22, 3
      %p231 = pnand %p229, %p230
      %p232 = pneg %p231
      // Predicated region
      $region9: #{tpu_custom_call.1} parent=5 // pred_check
        _
      $region10: #{tpu_custom_call.1} parent=5 // pred_check_branch
        %234 = sbr.rel (%p231) target = $region12
      $region11: #{tpu_custom_call.1} parent=5 // pred_region
        %s235 = ssub.s32 %s22, 1
        // Predicated region
        $region13: #{tpu_custom_call.1} parent=11 // pred_check
          %p236 = pneg %p95
        $region14: #{tpu_custom_call.1} parent=11 // pred_check_branch
          %238 = sbr.rel (%p236) target = $region16
        $region15: #{tpu_custom_call.1} parent=11 // pred_region
          _
        $region16: #{tpu_custom_call.1} parent=11 // pred_fallthru
          _
        // Predicated region
        $region17: #{tpu_custom_call.1} parent=11 // pred_check
          %p239 = pneg %p116
        $region18: #{tpu_custom_call.1} parent=11 // pred_check_branch
          %241 = sbr.rel (%p239) target = $region20
        $region19: #{tpu_custom_call.1} parent=11 // pred_region
          _
        $region20: #{tpu_custom_call.1} parent=11 // pred_fallthru
          _
        // Predicated region
        $region21: #{tpu_custom_call.1} parent=11 // pred_check
          %p242 = pneg %p137
        $region22: #{tpu_custom_call.1} parent=11 // pred_check_branch
          %244 = sbr.rel (%p242) target = $region24
        $region23: #{tpu_custom_call.1} parent=11 // pred_region
          _
        $region24: #{tpu_custom_call.1} parent=11 // pred_fallthru
          _
        // Predicated region
        $region25: #{tpu_custom_call.1} parent=11 // pred_check
          %p245 = pneg %p158
        $region26: #{tpu_custom_call.1} parent=11 // pred_check_branch
          %247 = sbr.rel (%p245) target = $region28
        $region27: #{tpu_custom_call.1} parent=11 // pred_region
          _
        $region28: #{tpu_custom_call.1} parent=11 // pred_fallthru
          _
        // Predicated region
        $region29: #{tpu_custom_call.1} parent=11 // pred_check
          %p248 = pneg %p179
        $region30: #{tpu_custom_call.1} parent=11 // pred_check_branch
          %250 = sbr.rel (%p248) target = $region32
        $region31: #{tpu_custom_call.1} parent=11 // pred_region
          _
        $region32: #{tpu_custom_call.1} parent=11 // pred_fallthru
          _
        // Predicated region
        $region33: #{tpu_custom_call.1} parent=11 // pred_check
          %p251 = pneg %p200
        $region34: #{tpu_custom_call.1} parent=11 // pred_check_branch
          %253 = sbr.rel (%p251) target = $region36
        $region35: #{tpu_custom_call.1} parent=11 // pred_region
          _
        $region36: #{tpu_custom_call.1} parent=11 // pred_fallthru
          _
      $region12: #{tpu_custom_call.1} parent=5 // pred_fallthru
        _
      %p254 = scmp.lt.s32.totalorder %s22, 2
      // Predicated region
      $region37: #{tpu_custom_call.1} parent=5 // pred_check
        %p255 = pneg %p254
      $region38: #{tpu_custom_call.1} parent=5 // pred_check_branch
        %257 = sbr.rel (%p255) target = $region40
      $region39: #{tpu_custom_call.1} parent=5 // pred_region
        // Predicated region
        $region41: #{tpu_custom_call.1} parent=39 // pred_check
          %p258 = pneg %p42
        $region42: #{tpu_custom_call.1} parent=39 // pred_check_branch
          %260 = sbr.rel (%p258) target = $region44
        $region43: #{tpu_custom_call.1} parent=39 // pred_region
          %s261 = sand.u32 %s32, 1
          %s262 = scalar_lea.sflag [#allocation5], %s261
          %s263 = sand.u32 %s32, 1
          %s264 = smul.addr %s263, 16
          %s265 = scalar_lea.vmem [#allocation4], %s264
          %s266 = smul.u32 4, %s22
          %s268 = ssub.s32 256, 256
          %269 = vsyncadd %s262, %s268
          %s270 = smul.addr %s266, 64
          %s271 = scalar_lea.hbm %s0, %s270
          %s273 = sshll.u32 %s265, 4
          %s274 = int_to_ptr.vmem [resolvable:$true] %s273
          %276 = dma.hbm_to_vmem [thread:$0]  %s271, 256, %s274, %s262
        $region44: #{tpu_custom_call.1} parent=39 // pred_fallthru
          _
        // Predicated region
        $region45: #{tpu_custom_call.1} parent=39 // pred_check
          %p277 = pneg %p68
        $region46: #{tpu_custom_call.1} parent=39 // pred_check_branch
          %279 = sbr.rel (%p277) target = $region48
        $region47: #{tpu_custom_call.1} parent=39 // pred_region
          %s280 = sand.u32 %s58, 1
          %s281 = scalar_lea.sflag [#allocation8], %s280
          %s282 = sand.u32 %s58, 1
          %s283 = smul.addr %s282, 256
          %s284 = scalar_lea.vmem [#allocation7], %s283
          %s285 = smul.u32 64, %s22
          %s287 = ssub.s32 4096, 4096
          %288 = vsyncadd %s281, %s287
          %s289 = smul.addr %s285, 64
          %s290 = scalar_lea.hbm %s1, %s289
          %s291 = sshll.u32 %s284, 4
          %s292 = int_to_ptr.vmem [resolvable:$true] %s291
          %297 = dma.hbm_to_vmem [thread:$0]  %s290, 4096, %s292, %s281, 64, 64, 4
        $region48: #{tpu_custom_call.1} parent=39 // pred_fallthru
          _
      $region40: #{tpu_custom_call.1} parent=5 // pred_fallthru
        _
      %p298 = scmp.le.s32.totalorder 1, %s22
      %p299 = scmp.lt.s32.totalorder %s22, 3
      %p300 = pnand %p298, %p299
      %p301 = pneg %p300
      // Predicated region
      $region49: #{tpu_custom_call.1} parent=5 // pred_check
        _
      $region50: #{tpu_custom_call.1} parent=5 // pred_check_branch
        %303 = sbr.rel (%p300) target = $region52
      $region51: #{tpu_custom_call.1} parent=5 // pred_region
        %s304 = ssub.s32 %s22, 1
        %s305 = sand.u32 %s35, 1
        %s306 = scalar_lea.sflag [#allocation5], %s305
        %s307 = sand.u32 %s35, 1
        %s308 = smul.addr %s307, 16
        %s309 = scalar_lea.vmem [#allocation4], %s308
        // Predicated region
        $region53: #{tpu_custom_call.1} parent=51 // pred_check
          %p310 = pneg %p48
        $region54: #{tpu_custom_call.1} parent=51 // pred_check_branch
          %312 = sbr.rel (%p310) target = $region56
        $region55: #{tpu_custom_call.1} parent=51 // pred_region
          %313 = dma.done %s306, 256
        $region56: #{tpu_custom_call.1} parent=51 // pred_fallthru
          _
        %s314 = sand.u32 %s61, 1
        %s315 = scalar_lea.sflag [#allocation8], %s314
        %s316 = sand.u32 %s61, 1
        %s317 = smul.addr %s316, 256
        %s318 = scalar_lea.vmem [#allocation7], %s317
        // Predicated region
        $region57: #{tpu_custom_call.1} parent=51 // pred_check
          %p319 = pneg %p74
        $region58: #{tpu_custom_call.1} parent=51 // pred_check_branch
          %321 = sbr.rel (%p319) target = $region60
        $region59: #{tpu_custom_call.1} parent=51 // pred_region
          %322 = dma.done %s315, 4096
        $region60: #{tpu_custom_call.1} parent=51 // pred_fallthru
          _
        %s323 = sand.u32 %s35, 1
        %s324 = scalar_lea.sflag [#allocation5], %s323
        %s325 = sand.u32 %s35, 1
        %s326 = smul.addr %s325, 16
        %s327 = scalar_lea.vmem [#allocation4], %s326
        %p328 = pneg %p48
        %p329 = pneg %p45
        %s330 = sand.u32 %s61, 1
        %s331 = scalar_lea.sflag [#allocation8], %s330
        %s332 = sand.u32 %s61, 1
        %s333 = smul.addr %s332, 256
        %s334 = scalar_lea.vmem [#allocation7], %s333
        %p335 = pneg %p74
        %p336 = pneg %p71
        %p337 = pneg %p95
        %p338 = pneg %p92
        %p339 = pneg %p116
        %p340 = pneg %p113
        %p341 = pneg %p137
        %p342 = pneg %p134
        %p343 = pneg %p158
        %p344 = pneg %p155
        %p345 = pneg %p179
        %p346 = pneg %p176
        %p347 = pneg %p200
        %p348 = pneg %p197
        %p349 = pneg %p221
        %p350 = pneg %p218
        %s351 = smul.u32 4, %s27
        %s352 = smul.u32 64, %s27
        %p354 = scmp.eq.s32.totalorder %s27, 0
        // Predicated region
        $region61: #{tpu_custom_call.1} parent=51 // pred_check
          %p355 = pneg %p354
        $region62: #{tpu_custom_call.1} parent=51 // pred_check_branch
          %357 = sbr.rel (%p355) target = $region64
        $region63: #{tpu_custom_call.1} parent=51 // pred_region
          %v358 = vld [vmem:[%s3] sm:$0xff]
          %359 = vst [vmem:[#allocation2] sm:$0xff] %v358
          %v360 = vld [vmem:[%s2] sm:$0x1]
          %v362 = vlaneseq
          %v363 = vshrl.u32 %v362, 7
          %v364 = vsub.s32 0, %v363
          %v365 = vrot.slane %v360, %v364
          %367 = vst [vmem:[#allocation2 + $0x8] sm:$0xff] %v365
        $region64: #{tpu_custom_call.1} parent=51 // pred_fallthru
          _
        %v368 = vld [vmem:[#allocation2 + $0x8] sm:$0xff]
        %v369 = vld [vmem:[%s309] sm:$0xff]
        %v370 = vld [vmem:[%s309 + $0x8] sm:$0xff]
        %v371 = vld [vmem:[%s318] sm:$0xf]
        %v372 = vld [vmem:[%s318 + $0x4] sm:$0xf]
        %v373 = vld [vmem:[%s318 + $0x8] sm:$0xf]
        %v374 = vld [vmem:[%s318 + $0xc] sm:$0xf]
        %v375 = vld [vmem:[%s318 + $0x10] sm:$0xf]
        %v376 = vld [vmem:[%s318 + $0x14] sm:$0xf]
        %v377 = vld [vmem:[%s318 + $0x18] sm:$0xf]
        %v378 = vld [vmem:[%s318 + $0x1c] sm:$0xf]
        %v379 = vld [vmem:[%s318 + $0x20] sm:$0xf]
        %v380 = vld [vmem:[%s318 + $0x24] sm:$0xf]
        %v381 = vld [vmem:[%s318 + $0x28] sm:$0xf]
        %v382 = vld [vmem:[%s318 + $0x2c] sm:$0xf]
        %v383 = vld [vmem:[%s318 + $0x30] sm:$0xf]
        %v384 = vld [vmem:[%s318 + $0x34] sm:$0xf]
        %v385 = vld [vmem:[%s318 + $0x38] sm:$0xf]
        %v386 = vld [vmem:[%s318 + $0x3c] sm:$0xf]
        %v387 = vld [vmem:[%s318 + $0x40] sm:$0xf]
        %v388 = vld [vmem:[%s318 + $0x44] sm:$0xf]
        %v389 = vld [vmem:[%s318 + $0x48] sm:$0xf]
        %v390 = vld [vmem:[%s318 + $0x4c] sm:$0xf]
        %v391 = vld [vmem:[%s318 + $0x50] sm:$0xf]
        %v392 = vld [vmem:[%s318 + $0x54] sm:$0xf]
        %v393 = vld [vmem:[%s318 + $0x58] sm:$0xf]
        %v394 = vld [vmem:[%s318 + $0x5c] sm:$0xf]
        %v395 = vld [vmem:[%s318 + $0x60] sm:$0xf]
        %v396 = vld [vmem:[%s318 + $0x64] sm:$0xf]
        %v397 = vld [vmem:[%s318 + $0x68] sm:$0xf]
        %v398 = vld [vmem:[%s318 + $0x6c] sm:$0xf]
        %v399 = vld [vmem:[%s318 + $0x70] sm:$0xf]
        %v400 = vld [vmem:[%s318 + $0x74] sm:$0xf]
        %v401 = vld [vmem:[%s318 + $0x78] sm:$0xf]
        %v402 = vld [vmem:[%s318 + $0x7c] sm:$0xf]
        %v403 = vld [vmem:[%s318 + $0x80] sm:$0xf]
        %v404 = vld [vmem:[%s318 + $0x84] sm:$0xf]
        %v405 = vld [vmem:[%s318 + $0x88] sm:$0xf]
        %v406 = vld [vmem:[%s318 + $0x8c] sm:$0xf]
        %v407 = vld [vmem:[%s318 + $0x90] sm:$0xf]
        %v408 = vld [vmem:[%s318 + $0x94] sm:$0xf]
        %v409 = vld [vmem:[%s318 + $0x98] sm:$0xf]
        %v410 = vld [vmem:[%s318 + $0x9c] sm:$0xf]
        %v411 = vld [vmem:[%s318 + $0xa0] sm:$0xf]
        %v412 = vld [vmem:[%s318 + $0xa4] sm:$0xf]
        %v413 = vld [vmem:[%s318 + $0xa8] sm:$0xf]
        %v414 = vld [vmem:[%s318 + $0xac] sm:$0xf]
        %v415 = vld [vmem:[%s318 + $0xb0] sm:$0xf]
        %v416 = vld [vmem:[%s318 + $0xb4] sm:$0xf]
        %v417 = vld [vmem:[%s318 + $0xb8] sm:$0xf]
        %v418 = vld [vmem:[%s318 + $0xbc] sm:$0xf]
        %v419 = vld [vmem:[%s318 + $0xc0] sm:$0xf]
        %v420 = vld [vmem:[%s318 + $0xc4] sm:$0xf]
        %v421 = vld [vmem:[%s318 + $0xc8] sm:$0xf]
        %v422 = vld [vmem:[%s318 + $0xcc] sm:$0xf]
        %v423 = vld [vmem:[%s318 + $0xd0] sm:$0xf]
        %v424 = vld [vmem:[%s318 + $0xd4] sm:$0xf]
        %v425 = vld [vmem:[%s318 + $0xd8] sm:$0xf]
        %v426 = vld [vmem:[%s318 + $0xdc] sm:$0xf]
        %v427 = vld [vmem:[%s318 + $0xe0] sm:$0xf]
        %v428 = vld [vmem:[%s318 + $0xe4] sm:$0xf]
        %v429 = vld [vmem:[%s318 + $0xe8] sm:$0xf]
        %v430 = vld [vmem:[%s318 + $0xec] sm:$0xf]
        %v431 = vld [vmem:[%s318 + $0xf0] sm:$0xf]
        %v432 = vld [vmem:[%s318 + $0xf4] sm:$0xf]
        %v433 = vld [vmem:[%s318 + $0xf8] sm:$0xf]
        %v434 = vld [vmem:[%s318 + $0xfc] sm:$0xf]
        %v437 = vunpack.c.l.b16 %v369
        %v438 = vunpack.c.h.b16 %v369
        %v439 = vunpack.c.l.b16 %v370
        %v440 = vunpack.c.h.b16 %v370
        %v441 = vpack.c.b16 %v437, %v437
        %v442 = vpack.c.b16 %v438, %v438
        %v443 = vpack.c.b16 %v439, %v439
        %v444 = vpack.c.b16 %v440, %v440
        %v513 = vunpack.c.l.b16 %v371
        %v514 = vunpack.c.l.b16 %v372
        %v515 = vunpack.c.l.b16 %v373
        %v516 = vunpack.c.l.b16 %v374
        %v517 = vunpack.c.l.b16 %v375
        %v518 = vunpack.c.l.b16 %v376
        %v519 = vunpack.c.l.b16 %v377
        %v520 = vunpack.c.l.b16 %v378
        %v521 = vunpack.c.l.b16 %v379
        %v522 = vunpack.c.l.b16 %v380
        %v523 = vunpack.c.l.b16 %v381
        %v524 = vunpack.c.l.b16 %v382
        %v525 = vunpack.c.l.b16 %v383
        %v526 = vunpack.c.l.b16 %v384
        %v527 = vunpack.c.l.b16 %v385
        %v528 = vunpack.c.l.b16 %v386
        %v529 = vunpack.c.l.b16 %v387
        %v530 = vunpack.c.l.b16 %v388
        %v531 = vunpack.c.l.b16 %v389
        %v532 = vunpack.c.l.b16 %v390
        %v533 = vunpack.c.l.b16 %v391
        %v534 = vunpack.c.l.b16 %v392
        %v535 = vunpack.c.l.b16 %v393
        %v536 = vunpack.c.l.b16 %v394
        %v537 = vunpack.c.l.b16 %v395
        %v538 = vunpack.c.l.b16 %v396
        %v539 = vunpack.c.l.b16 %v397
        %v540 = vunpack.c.l.b16 %v398
        %v541 = vunpack.c.l.b16 %v399
        %v542 = vunpack.c.l.b16 %v400
        %v543 = vunpack.c.l.b16 %v401
        %v544 = vunpack.c.l.b16 %v402
        %v545 = vunpack.c.l.b16 %v403
        %v546 = vunpack.c.l.b16 %v404
        %v547 = vunpack.c.l.b16 %v405
        %v548 = vunpack.c.l.b16 %v406
        %v549 = vunpack.c.l.b16 %v407
        %v550 = vunpack.c.l.b16 %v408
        %v551 = vunpack.c.l.b16 %v409
        %v552 = vunpack.c.l.b16 %v410
        %v553 = vunpack.c.l.b16 %v411
        %v554 = vunpack.c.l.b16 %v412
        %v555 = vunpack.c.l.b16 %v413
        %v556 = vunpack.c.l.b16 %v414
        %v557 = vunpack.c.l.b16 %v415
        %v558 = vunpack.c.l.b16 %v416
        %v559 = vunpack.c.l.b16 %v417
        %v560 = vunpack.c.l.b16 %v418
        %v561 = vunpack.c.l.b16 %v419
        %v562 = vunpack.c.l.b16 %v420
        %v563 = vunpack.c.l.b16 %v421
        %v564 = vunpack.c.l.b16 %v422
        %v565 = vunpack.c.l.b16 %v423
        %v566 = vunpack.c.l.b16 %v424
        %v567 = vunpack.c.l.b16 %v425
        %v568 = vunpack.c.l.b16 %v426
        %v569 = vunpack.c.l.b16 %v427
        %v570 = vunpack.c.l.b16 %v428
        %v571 = vunpack.c.l.b16 %v429
        %v572 = vunpack.c.l.b16 %v430
        %v573 = vunpack.c.l.b16 %v431
        %v574 = vunpack.c.l.b16 %v432
        %v575 = vunpack.c.l.b16 %v433
        %v576 = vunpack.c.l.b16 %v434
        %v577 = vpack.c.b16 %v514, %v513
        %v578 = vpack.c.b16 %v516, %v515
        %v579 = vpack.c.b16 %v518, %v517
        %v580 = vpack.c.b16 %v520, %v519
        %v581 = vpack.c.b16 %v522, %v521
        %v582 = vpack.c.b16 %v524, %v523
        %v583 = vpack.c.b16 %v526, %v525
        %v584 = vpack.c.b16 %v528, %v527
        %v585 = vpack.c.b16 %v530, %v529
        %v586 = vpack.c.b16 %v532, %v531
        %v587 = vpack.c.b16 %v534, %v533
        %v588 = vpack.c.b16 %v536, %v535
        %v589 = vpack.c.b16 %v538, %v537
        %v590 = vpack.c.b16 %v540, %v539
        %v591 = vpack.c.b16 %v542, %v541
        %v592 = vpack.c.b16 %v544, %v543
        %v593 = vpack.c.b16 %v546, %v545
        %v594 = vpack.c.b16 %v548, %v547
        %v595 = vpack.c.b16 %v550, %v549
        %v596 = vpack.c.b16 %v552, %v551
        %v597 = vpack.c.b16 %v554, %v553
        %v598 = vpack.c.b16 %v556, %v555
        %v599 = vpack.c.b16 %v558, %v557
        %v600 = vpack.c.b16 %v560, %v559
        %v601 = vpack.c.b16 %v562, %v561
        %v602 = vpack.c.b16 %v564, %v563
        %v603 = vpack.c.b16 %v566, %v565
        %v604 = vpack.c.b16 %v568, %v567
        %v605 = vpack.c.b16 %v570, %v569
        %v606 = vpack.c.b16 %v572, %v571
        %v607 = vpack.c.b16 %v574, %v573
        %v608 = vpack.c.b16 %v576, %v575
        %641 = vmatprep.subr.bf16.mxu0 0
        %642 = vmatpush1.bf16.msra.mxu0 %v577
        %643 = vmatprep.subr.bf16.mxu0 0
        %644 = vmatpush1.bf16.msra.mxu0 %v578
        %645 = vmatprep.subr.bf16.mxu0 0
        %646 = vmatpush1.bf16.msra.mxu0 %v579
        %647 = vmatprep.subr.bf16.mxu0 0
        %648 = vmatpush1.bf16.msra.mxu0 %v580
        %649 = vmatprep.subr.bf16.mxu0 0
        %650 = vmatpush1.bf16.msra.mxu0 %v581
        %651 = vmatprep.subr.bf16.mxu0 0
        %652 = vmatpush1.bf16.msra.mxu0 %v582
        %653 = vmatprep.subr.bf16.mxu0 0
        %654 = vmatpush1.bf16.msra.mxu0 %v583
        %655 = vmatprep.subr.bf16.mxu0 0
        %656 = vmatpush1.bf16.msra.mxu0 %v584
        %657 = vmatprep.subr.bf16.mxu0 0
        %658 = vmatpush1.bf16.msra.mxu0 %v585
        %659 = vmatprep.subr.bf16.mxu0 0
        %660 = vmatpush1.bf16.msra.mxu0 %v586
        %661 = vmatprep.subr.bf16.mxu0 0
        %662 = vmatpush1.bf16.msra.mxu0 %v587
        %663 = vmatprep.subr.bf16.mxu0 0
        %664 = vmatpush1.bf16.msra.mxu0 %v588
        %665 = vmatprep.subr.bf16.mxu0 0
        %666 = vmatpush1.bf16.msra.mxu0 %v589
        %667 = vmatprep.subr.bf16.mxu0 0
        %668 = vmatpush1.bf16.msra.mxu0 %v590
        %669 = vmatprep.subr.bf16.mxu0 0
        %670 = vmatpush1.bf16.msra.mxu0 %v591
        %671 = vmatprep.subr.bf16.mxu0 0
        %672 = vmatpush1.bf16.msra.mxu0 %v592
        %673 = vmatprep.mubr.bf16.mxu0 %v442
        %674 = vmatmul.mubr.bf16.gmra.mrb[0].mxu0 %v441
        %v675 = vpop.f32.mrb[0].mxu0
        %v676 = vadd.f32 0.0, %v675
        %v677 = vpop.f32.mrb[0].mxu0
        %v678 = vpop.f32.mrb[0].mxu0
        %v679 = vpop.f32.mrb[0].mxu0
        %680 = vdwg.mxu0
        %681 = vmatprep.subr.bf16.mxu0 0
        %682 = vmatpush1.bf16.msra.mxu0 %v593
        %683 = vmatprep.subr.bf16.mxu0 0
        %684 = vmatpush1.bf16.msra.mxu0 %v594
        %685 = vmatprep.subr.bf16.mxu0 0
        %686 = vmatpush1.bf16.msra.mxu0 %v595
        %687 = vmatprep.subr.bf16.mxu0 0
        %688 = vmatpush1.bf16.msra.mxu0 %v596
        %689 = vmatprep.subr.bf16.mxu0 0
        %690 = vmatpush1.bf16.msra.mxu0 %v597
        %691 = vmatprep.subr.bf16.mxu0 0
        %692 = vmatpush1.bf16.msra.mxu0 %v598
        %693 = vmatprep.subr.bf16.mxu0 0
        %694 = vmatpush1.bf16.msra.mxu0 %v599
        %695 = vmatprep.subr.bf16.mxu0 0
        %696 = vmatpush1.bf16.msra.mxu0 %v600
        %697 = vmatprep.subr.bf16.mxu0 0
        %698 = vmatpush1.bf16.msra.mxu0 %v601
        %699 = vmatprep.subr.bf16.mxu0 0
        %700 = vmatpush1.bf16.msra.mxu0 %v602
        %701 = vmatprep.subr.bf16.mxu0 0
        %702 = vmatpush1.bf16.msra.mxu0 %v603
        %703 = vmatprep.subr.bf16.mxu0 0
        %704 = vmatpush1.bf16.msra.mxu0 %v604
        %705 = vmatprep.subr.bf16.mxu0 0
        %706 = vmatpush1.bf16.msra.mxu0 %v605
        %707 = vmatprep.subr.bf16.mxu0 0
        %708 = vmatpush1.bf16.msra.mxu0 %v606
        %709 = vmatprep.subr.bf16.mxu0 0
        %710 = vmatpush1.bf16.msra.mxu0 %v607
        %711 = vmatprep.subr.bf16.mxu0 0
        %712 = vmatpush1.bf16.msra.mxu0 %v608
        %713 = vmatprep.mubr.bf16.mxu0 %v444
        %714 = vmatmul.mubr.bf16.gmra.mrb[0].mxu0 %v443
        %v715 = vpop.f32.mrb[0].mxu0
        %v716 = vadd.f32 %v676, %v715
        %v717 = vpop.f32.mrb[0].mxu0
        %v718 = vpop.f32.mrb[0].mxu0
        %v719 = vpop.f32.mrb[0].mxu0
        %720 = vdwg.mxu0
        %v721 = vadd.f32 %v368, %v716
        %722 = vst [vmem:[#allocation2 + $0x8] sm:$0xff] %v721
        %p723 = scmp.eq.s32.totalorder %s27, 1
        // Predicated region
        $region65: #{tpu_custom_call.1} parent=51 // pred_check
          %p724 = pneg %p723
        $region66: #{tpu_custom_call.1} parent=51 // pred_check_branch
          %726 = sbr.rel (%p724) target = $region68
        $region67: #{tpu_custom_call.1} parent=51 // pred_region
          %s727 = sld [smem:[#allocation3]]
          %v728 = vld [vmem:[#allocation2] sm:$0xff]
          %v729 = vld [vmem:[#allocation2 + $0x8] sm:$0xff]
          %v730 = vpack.c.bf16 %v729, %v728
          %731 = vmatprep.subr.bf16.mxu0 0
          %732 = vmatpush1.bf16.xpose.msra.mxu0 %v730
          %733 = vmatprep.subr.bf16.mxu0 0
          %734 = vmatpush1.bf16.xpose.msra.mxu0 0
          %735 = vmatprep.subr.bf16.mxu0 0
          %736 = vmatpush1.bf16.xpose.msra.mxu0 0
          %737 = vmatprep.subr.bf16.mxu0 0
          %738 = vmatpush1.bf16.xpose.msra.mxu0 0
          %739 = vmatprep.subr.bf16.mxu0 0
          %740 = vmatpush1.bf16.xpose.msra.mxu0 0
          %741 = vmatprep.subr.bf16.mxu0 0
          %742 = vmatpush1.bf16.xpose.msra.mxu0 0
          %743 = vmatprep.subr.bf16.mxu0 0
          %744 = vmatpush1.bf16.xpose.msra.mxu0 0
          %745 = vmatprep.subr.bf16.mxu0 0
          %746 = vmatpush1.bf16.xpose.msra.mxu0 0
          %747 = vmatprep.subr.bf16.mxu0 0
          %748 = vmatpush1.bf16.xpose.msra.mxu0 0
          %749 = vmatprep.subr.bf16.mxu0 0
          %750 = vmatpush1.bf16.xpose.msra.mxu0 0
          %751 = vmatprep.subr.bf16.mxu0 0
          %752 = vmatpush1.bf16.xpose.msra.mxu0 0
          %753 = vmatprep.subr.bf16.mxu0 0
          %754 = vmatpush1.bf16.xpose.msra.mxu0 0
          %755 = vmatprep.subr.bf16.mxu0 0
          %756 = vmatpush1.bf16.xpose.msra.mxu0 0
          %757 = vmatprep.subr.bf16.mxu0 0
          %758 = vmatpush1.bf16.xpose.msra.mxu0 0
          %759 = vmatprep.subr.bf16.mxu0 0
          %760 = vmatpush1.bf16.xpose.msra.mxu0 0
          %761 = vmatprep.subr.bf16.mxu0 0
          %762 = vmatpush1.bf16.xpose.msra.mxu0 0
          %763 = vmatprep.mubr.bf16.mxu0 0
          %764 = vmatmul.mubr.bf16.gmra.mrb[0].mxu0 %v730
          %v765 = vpop.f32.mrb[0].mxu0
          %v766 = vadd.f32 0.0, %v765
          %v767 = vpop.f32.mrb[0].mxu0
          %v768 = vpop.f32.mrb[0].mxu0
          %v769 = vadd.f32 0.0, %v768
          %v770 = vpop.f32.mrb[0].mxu0
          %771 = vdwg.mxu0
          %v772 = vstv %s727
          %v773 = vrcp.pop %v772
          %v774 = vmul.f32 %v766, %v773
          %v775 = vmul.f32 %v769, %v773
          %vm776 = vcmask 130112
          %v777 = vsel %vm776, %v774, -inf
          %778 = vmax.xlane.f32.xlu0 %v777
          %v779 = vpop.xlane.xlu0 %778
          %v780 = vsub.f32 %v774, %v779
          %v781 = vmul.f32 %v780, 1.442695
          %v782 = vpow.pop %v781
          %784 = vrot.lane.b32.xlu0 %v782, 120
          %v785 = vpop.permute.xlu0 %784
          %vm787 = vcmask 64512
          %v788 = vsel %vm787, %v785, 0.0
          %789 = vadd.xlane.f32.xlu0 %v788
          %v790 = vpop.xlane.xlu0 %789
          %v791 = vlog2.pop %v790
          %v792 = vmul.f32 %v791, 0.6931472
          %v793 = vsub.f32 %v780, %v792
          %v794 = vrcp.pop %v790
          %v795 = vmul.f32 %v782, %v794
          %v796 = vsel %vm787, %v775, -inf
          %797 = vmax.xlane.f32.xlu0 %v796
          %v798 = vpop.xlane.xlu0 %797
          %v799 = vsub.f32 %v775, %v798
          %v800 = vmul.f32 %v799, 1.442695
          %v801 = vpow.pop %v800
          %v802 = vsel %vm787, %v801, 0.0
          %803 = vadd.xlane.f32.xlu0 %v802
          %v804 = vpop.xlane.xlu0 %803
          %v805 = vlog2.pop %v804
          %v806 = vmul.f32 %v805, 0.6931472
          %v807 = vsub.f32 %v799, %v806
          %v808 = vrcp.pop %v804
          %v809 = vmul.f32 %v801, %v808
          %811 = vrot.lane.b32.xlu0 %v766, 8
          %v812 = vpop.permute.xlu0 %811
          %v814 = vadd.f32 %v769, %v812
          %s815 = smul.f32 %s727, 0.5
          %v816 = vstv %s815
          %v817 = vmul.f32 %v814, %v816
          %v818 = vsel %vm776, %v817, -inf
          %819 = vmax.xlane.f32.xlu0 %v818
          %v820 = vpop.xlane.xlu0 %819
          %v821 = vrot.slane %v820, 4
          %v822 = vmax.f32 %v820, %v821
          %v823 = vrot.slane %v822, 2
          %v824 = vmax.f32 %v822, %v823
          %v825 = vrot.slane %v824, 1
          %v826 = vmax.f32 %v824, %v825
          %v827 = vsub.f32 %v817, %v826
          %v828 = vmul.f32 %v827, 1.442695
          %v829 = vpow.pop %v828
          %831 = vrot.lane.b32.xlu0 %v829, 120
          %v832 = vpop.permute.xlu0 %831
          %v834 = vsel %vm787, %v832, 0.0
          %835 = vadd.xlane.f32.xlu0 %v834
          %v836 = vpop.xlane.xlu0 %835
          %v837 = vsel %vm776, %v829, 0.0
          %v838 = vrot.slane %v837, 4
          %v839 = vadd.f32 %v837, %v838
          %v840 = vrot.slane %v839, 2
          %v841 = vadd.f32 %v839, %v840
          %v842 = vrot.slane %v841, 1
          %v843 = vadd.f32 %v841, %v842
          %v844 = vrcp.pop %v836
          %v845 = vmul.f32 %v829, %v844
          %v846 = vrcp.pop %v843
          %v847 = vmul.f32 %v829, %v846
          %v848 = vsub.f32 0.0, %v845
          %v849 = vmul.f32 %v848, %v793
          %851 = vrot.lane.b32.xlu0 %v849, 120
          %v852 = vpop.permute.xlu0 %851
          %v854 = vsel %vm787, %v852, 0.0
          %855 = vadd.xlane.f32.xlu0 %v854
          %v856 = vpop.xlane.xlu0 %855
          %v857 = vsub.f32 0.0, %v847
          %859 = vrot.lane.b32.xlu0 %v807, 8
          %v860 = vpop.permute.xlu0 %859
          %v862 = vmul.f32 %v857, %v860
          %864 = vrot.lane.b32.xlu0 %v862, 120
          %v865 = vpop.permute.xlu0 %864
          %v867 = vsel %vm787, %v865, 0.0
          %868 = vadd.xlane.f32.xlu0 %v867
          %v869 = vpop.xlane.xlu0 %868
          %vm870 = vcmask 7168
          %v871 = vsel %vm870, %v856, 0.0
          %872 = vadd.xlane.f32.xlu0 %v871
          %v873 = vpop.xlane.xlu0 %872
          %v874 = vrot.slane %v873, 4
          %v875 = vadd.f32 %v873, %v874
          %v876 = vrot.slane %v875, 2
          %v877 = vadd.f32 %v875, %v876
          %v878 = vrot.slane %v877, 1
          %v879 = vadd.f32 %v877, %v878
          %s880 = vtos %v879
          %v881 = vstv %s880
          %v882 = vsel %vm870, %v869, 0.0
          %883 = vadd.xlane.f32.xlu0 %v882
          %v884 = vpop.xlane.xlu0 %883
          %v885 = vrot.slane %v884, 4
          %v886 = vadd.f32 %v884, %v885
          %v887 = vrot.slane %v886, 2
          %v888 = vadd.f32 %v886, %v887
          %v889 = vrot.slane %v888, 1
          %v890 = vadd.f32 %v888, %v889
          %s891 = vtos %v890
          %v892 = vstv %s891
          %v893 = vadd.f32 %v881, %v892
          %v894 = vmul.f32 %v893, 0.0625
          %v895 = vld [vmem:[%s4] sm:$0xff]
          %v896 = vld [vmem:[%s5] sm:$0x3]
          %897 = vset.pattern.permute.xlu0 0
          %898 = vperm.xlu0 %897, %v895
          %v899 = vpop.permute.xlu0 %898
          %v900 = vlaneseq
          %v901 = vshrl.u32 %v900, 7
          %v902 = vsub.s32 0, %v901
          %v903 = vrot.slane %v896, %v902
          %vm904 = vcmp.eq.s32.totalorder %v899, %v903
          %v905 = vsel %vm904, 1, 0
          %v906 = vcvt.s32.f32 %v905
          %v907 = vsel %vm787, %v906, 0.0
          %908 = vadd.xlane.f32.xlu0 %v907
          %v909 = vpop.xlane.xlu0 %908
          %v910 = vrcp.pop %v909
          %912 = vrot.lane.b32.xlu0 %v906, 8
          %v913 = vpop.permute.xlu0 %912
          %v915 = vmul.f32 %v795, %v913
          %917 = vrot.lane.b32.xlu0 %v915, 120
          %v918 = vpop.permute.xlu0 %917
          %v920 = vsel %vm787, %v918, 0.0
          %921 = vadd.xlane.f32.xlu0 %v920
          %v922 = vpop.xlane.xlu0 %921
          %v923 = vmul.f32 %v809, %v906
          %v924 = vsel %vm787, %v923, 0.0
          %925 = vadd.xlane.f32.xlu0 %v924
          %v926 = vpop.xlane.xlu0 %925
          %v927 = vmul.f32 %v922, %v910
          %v928 = vlog2.pop %v927
          %v929 = vmul.f32 %v928, 0.6931472
          %v930 = vsub.f32 0.0, %v929
          %v931 = vmul.f32 %v926, %v910
          %v932 = vlog2.pop %v931
          %v933 = vmul.f32 %v932, 0.6931472
          %v934 = vsub.f32 %v930, %v933
          %v935 = vsel %vm870, %v934, 0.0
          %936 = vadd.xlane.f32.xlu0 %v935
          %v937 = vpop.xlane.xlu0 %936
          %v938 = vrot.slane %v937, 4
          %v939 = vadd.f32 %v937, %v938
          %v940 = vrot.slane %v939, 2
          %v941 = vadd.f32 %v939, %v940
          %v942 = vrot.slane %v941, 1
          %v943 = vadd.f32 %v941, %v942
          %s944 = vtos %v943
          %v945 = vstv %s944
          %946 = vset.pattern.permute.xlu0 1
          %947 = vperm.xlu0 %946, %v895
          %v948 = vpop.permute.xlu0 %947
          %v949 = vlaneseq
          %v950 = vshrl.u32 %v949, 7
          %v951 = vsub.s32 1, %v950
          %v952 = vrot.slane %v896, %v951
          %vm953 = vcmp.eq.s32.totalorder %v948, %v952
          %v954 = vsel %vm953, 1, 0
          %v955 = vcvt.s32.f32 %v954
          %v956 = vsel %vm787, %v955, 0.0
          %957 = vadd.xlane.f32.xlu0 %v956
          %v958 = vpop.xlane.xlu0 %957
          %v959 = vrcp.pop %v958
          %961 = vrot.lane.b32.xlu0 %v955, 8
          %v962 = vpop.permute.xlu0 %961
          %v964 = vmul.f32 %v795, %v962
          %966 = vrot.lane.b32.xlu0 %v964, 120
          %v967 = vpop.permute.xlu0 %966
          %v969 = vsel %vm787, %v967, 0.0
          %970 = vadd.xlane.f32.xlu0 %v969
          %v971 = vpop.xlane.xlu0 %970
          %v972 = vmul.f32 %v809, %v955
          %v973 = vsel %vm787, %v972, 0.0
          %974 = vadd.xlane.f32.xlu0 %v973
          %v975 = vpop.xlane.xlu0 %974
          %v976 = vmul.f32 %v971, %v959
          %v977 = vlog2.pop %v976
          %v978 = vmul.f32 %v977, 0.6931472
          %v979 = vsub.f32 0.0, %v978
          %v980 = vmul.f32 %v975, %v959
          %v981 = vlog2.pop %v980
          %v982 = vmul.f32 %v981, 0.6931472
          %v983 = vsub.f32 %v979, %v982
          %v984 = vsel %vm870, %v983, 0.0
          %985 = vadd.xlane.f32.xlu0 %v984
          %v986 = vpop.xlane.xlu0 %985
          %v987 = vrot.slane %v986, 4
          %v988 = vadd.f32 %v986, %v987
          %v989 = vrot.slane %v988, 2
          %v990 = vadd.f32 %v988, %v989
          %v991 = vrot.slane %v990, 1
          %v992 = vadd.f32 %v990, %v991
          %s993 = vtos %v992
          %v994 = vstv %s993
          %v995 = vld [vmem:[%s7] sm:$0x1]
          %v996 = vsub.f32 0.0, %v995
          %v997 = vmul.f32 %v996, 1.442695
          %v998 = vpow.pop %v997
          %v999 = vsub.f32 0.0, %v894
          %v1000 = vmul.f32 %v999, %v998
          %v1001 = vmul.f32 %v945, %v998
          %1003 = vrot.lane.b32.xlu0 %v1001, 127
          %v1004 = vpop.permute.xlu0 %1003
          %v1006 = vadd.f32 %v1000, %v1004
          %v1007 = vmul.f32 %v994, %v998
          %1009 = vrot.lane.b32.xlu0 %v1007, 126
          %v1010 = vpop.permute.xlu0 %1009
          %v1012 = vadd.f32 %v1006, %v1010
          %vm1013 = vcmask 1040384
          %v1014 = vsel %vm1013, %v995, 0.0
          %1015 = vadd.xlane.f32.xlu0 %v1014
          %v1016 = vpop.xlane.xlu0 %1015
          %v1017 = vrot.slane %v1016, 4
          %v1018 = vadd.f32 %v1016, %v1017
          %v1019 = vrot.slane %v1018, 2
          %v1020 = vadd.f32 %v1018, %v1019
          %v1021 = vrot.slane %v1020, 1
          %v1022 = vadd.f32 %v1020, %v1021
          %s1023 = vtos %v1022
          %v1024 = vstv %s1023
          %v1025 = vadd.f32 %v1012, %v1024
          %1027 = vset.pattern.permute.xlu0 0
          %1028 = vperm.xlu0 %1027, %v1025
          %v1029 = vpop.permute.xlu0 %1028
          %v1031 = vlaneseq
          %v1032 = vshrl.u32 %v1031, 7
          %v1033 = vsub.s32 0, %v1032
          %v1034 = vrot.slane %v1029, %v1033
          %1035 = vst [vmem:[#allocation9] sm:$0x1] %v1034
        $region68: #{tpu_custom_call.1} parent=51 // pred_fallthru
          _
        // Predicated region
        $region69: #{tpu_custom_call.1} parent=51 // pred_check
          %p1036 = pneg %p218
        $region70: #{tpu_custom_call.1} parent=51 // pred_check_branch
          %1038 = sbr.rel (%p1036) target = $region72
        $region71: #{tpu_custom_call.1} parent=51 // pred_region
          %s1040 = ssub.s32 16, 16
          %1041 = vsyncadd [#allocation6], %s1040
          %s1043 = sshll.u32 [#allocation9], 4
          %s1044 = int_to_ptr.vmem [resolvable:$true] %s1043
          %1046 = dma.vmem_to_hbm [thread:$0]  %s1044, 16, %s8, [#allocation6]
        $region72: #{tpu_custom_call.1} parent=51 // pred_fallthru
          _
        // Predicated region
        $region73: #{tpu_custom_call.1} parent=51 // pred_check
          %p1047 = pneg %p218
        $region74: #{tpu_custom_call.1} parent=51 // pred_check_branch
          %1049 = sbr.rel (%p1047) target = $region76
        $region75: #{tpu_custom_call.1} parent=51 // pred_region
          %1050 = dma.done [#allocation6], 16
        $region76: #{tpu_custom_call.1} parent=51 // pred_fallthru
          _
      $region52: #{tpu_custom_call.1} parent=5 // pred_fallthru
        _
      %p1051 = scmp.le.s32.totalorder 2, %s22
      // Predicated region
      $region77: #{tpu_custom_call.1} parent=5 // pred_check
        %p1052 = pneg %p1051
      $region78: #{tpu_custom_call.1} parent=5 // pred_check_branch
        %1054 = sbr.rel (%p1052) target = $region80
      $region79: #{tpu_custom_call.1} parent=5 // pred_region
        %s1055 = ssub.s32 %s22, 2
      $region80: #{tpu_custom_call.1} parent=5 // pred_fallthru
        _
    $region6: #{tpu_custom_call.1} parent=1 // loop_footer
      %s26 = sadd.s32 1, %s22
    $region7: #{tpu_custom_call.1} parent=1 // loop_footer_branch
      %21 = sbr.rel target = $region3
    $region8: #{tpu_custom_call.1} parent=1 // loop_exit
      _
    %1056 = vsyncpa [#allocation5], 1
    %s1057 = scalar_lea.sflag [#allocation5], 1
    %1058 = vsyncpa %s1057, 1
    %1059 = vsyncpa [#allocation8], 1
    %s1060 = scalar_lea.sflag [#allocation8], 1
    %1061 = vsyncpa %s1060, 1
    %1062 = vsyncpa [#allocation6], 1
    %s1063 = scalar_lea.sflag [#allocation6], 1
    %1064 = vsyncpa %s1063, 1

</llo_original>
